<compile_context>
chip_gen: v6e
topology: v6e:2x2x1
jax: 0.10.0
libtpu: 0.0.40
codegen_flags: <defaults>
</compile_context>

<pallas_src>
import jax
import jax.numpy as jnp
from jax.experimental import pallas as pl
from jax.experimental.pallas import tpu as pltpu

N_HIDDEN = 32
N_LATENT = 8


def _ru(n, m):
    return ((n + m - 1) // m) * m


def make_omni_kernel(feats, x_w, out_w):
    """Kernel with feats / slab geometry baked in statically."""
    H = N_HIDDEN
    L = N_LATENT
    # Sublane offsets of each weight block inside the fused bf16 weight slab.
    # All offsets are multiples of 16 (bf16 sublane tile) because x_w % 128 == 0.
    r_w1 = x_w            # GRU layer-1 fused input weights (32, 96)
    r_e1 = x_w + 32       # encoder Linear(32,32)
    r_e2 = x_w + 64       # encoder Linear(32,32)
    r_e3 = x_w + 96       # encoder Linear(32,16)
    r_d1 = x_w + 128      # decoder Linear(8,32)  (K zero-padded to 16 rows)
    r_d2 = x_w + 144      # decoder Linear(32,32)
    r_d3 = x_w + 176      # decoder Linear(32,feats)

    def kernel(xeps_ref, w_ref, b_ref, out_ref):
        f32 = jnp.float32
        bf16 = jnp.bfloat16

        def dot(a, wblk):
            # bf16 MXU inputs, f32 accumulation.
            return jnp.dot(a.astype(bf16), wblk, preferred_element_type=f32)

        xe = xeps_ref[...]                         # (TB, x_w) f32: [x | eps | 0]
        b = b_ref[...]                             # (8, WW)   f32

        def prelu(v, slope_row):
            return jnp.where(v >= 0.0, v, slope_row * v)

        # ---- 2-layer GRU, single timestep, zero initial hidden (hidden=None):
        #        r = sig(x@Wir + bir + bhr); z = sig(x@Wiz + biz + bhz)
        #        n = tanh(x@Win + bin + r*bhn);  h' = (1 - z) * n
        #      (all h@Whh matmuls removed; Whh never loaded).
        # TODO(synk): a nonzero `hidden` input would need the full GRU cell with
        #             the h@Whh terms; only the default hidden=None path is here.
        def gru(inp, wblk, brow):
            g = dot(inp, wblk) + brow              # (TB, 128), unmasked bias add
            r = jax.nn.sigmoid(g[:, 0:H])
            z = jax.nn.sigmoid(g[:, H:2 * H])
            n = jnp.tanh(g[:, 2 * H:3 * H] + r * g[:, 3 * H:4 * H])
            return (1.0 - z) * n

        h1 = gru(xe, w_ref[0:x_w, 0:128], b[0:1, 0:128])           # (TB, 32)
        h2 = gru(h1, w_ref[r_w1:r_w1 + H, 0:128], b[1:2, 0:128])   # (TB, 32)

        # ---- Encoder (Flatten is a no-op in this layout).
        e1 = prelu(dot(h2, w_ref[r_e1:r_e1 + H, 0:128])[:, 0:H] + b[2:3, 0:H],
                   b[2:3, 32:64])
        e2 = prelu(dot(e1, w_ref[r_e2:r_e2 + H, 0:128])[:, 0:H] + b[3:4, 0:H],
                   b[3:4, 32:64])
        lat = dot(e2, w_ref[r_e3:r_e3 + H, 0:128])[:, 0:2 * L] + b[4:5, 0:2 * L]
        mu = lat[:, 0:L]
        logvar = lat[:, L:2 * L]

        # ---- Reparameterisation (eps was packed into spare lanes of xeps).
        eps = xe[:, feats:feats + L]
        z_lat = mu + eps * jnp.exp(0.5 * logvar)                   # (TB, 8)

        # ---- Decoder.
        z16 = jnp.concatenate([z_lat, jnp.zeros_like(z_lat)], axis=-1)  # (TB, 16)
        d1 = prelu(dot(z16, w_ref[r_d1:r_d1 + 16, 0:128])[:, 0:H] + b[5:6, 0:H],
                   b[5:6, 32:64])
        d2 = prelu(dot(d1, w_ref[r_d2:r_d2 + H, 0:128])[:, 0:H] + b[6:7, 0:H],
                   b[6:7, 32:64])
        recon = jax.nn.sigmoid(dot(d2, w_ref[r_d3:r_d3 + H, :])[:, 0:feats]
                               + b[7:8, 0:feats])                  # (TB, feats)

        # ---- Single lane-dense packed output row per sample.
        used = feats + 2 * L + 2 * H
        parts = [recon, mu, logvar, h1, h2]
        if out_w > used:
            parts.append(jnp.zeros((recon.shape[0], out_w - used), f32))
        out_ref[...] = jnp.concatenate(parts, axis=-1)

    return kernel


def init_params(key, feats):
    """Deterministic synthetic parameters (shapes match the PyTorch module)."""
    keys = jax.random.split(key, 24)
    k = iter(keys)
    s_gru = 1.0 / jnp.sqrt(jnp.float32(N_HIDDEN))

    def u(kk, shape, scale):
        return jax.random.uniform(kk, shape, jnp.float32, -scale, scale)

    p = {}
    # GRU layer 0: torch weight_ih_l0 is (3H, F); stored here as (3, F, H), gate
    # order (r, z, n).
    p["wih0"] = u(next(k), (3, feats, N_HIDDEN), s_gru)
    p["whh0"] = u(next(k), (3, N_HIDDEN, N_HIDDEN), s_gru)   # unused on h0==0 path
    p["bih0"] = u(next(k), (3, N_HIDDEN), s_gru)
    p["bhh0"] = u(next(k), (3, N_HIDDEN), s_gru)
    # GRU layer 1.
    p["wih1"] = u(next(k), (3, N_HIDDEN, N_HIDDEN), s_gru)
    p["whh1"] = u(next(k), (3, N_HIDDEN, N_HIDDEN), s_gru)   # unused on h0==0 path
    p["bih1"] = u(next(k), (3, N_HIDDEN), s_gru)
    p["bhh1"] = u(next(k), (3, N_HIDDEN), s_gru)

    def lin(kk, fan_in, fan_out):
        k_w, k_b = jax.random.split(kk)
        sc = 1.0 / jnp.sqrt(jnp.float32(fan_in))
        return u(k_w, (fan_in, fan_out), sc), u(k_b, (1, fan_out), sc)

    # Encoder: Linear(32,32), Linear(32,32), Linear(32, 2*latent).
    p["we1"], p["be1"] = lin(next(k), N_HIDDEN, N_HIDDEN)
    p["we2"], p["be2"] = lin(next(k), N_HIDDEN, N_HIDDEN)
    p["we3"], p["be3"] = lin(next(k), N_HIDDEN, 2 * N_LATENT)
    # Decoder: Linear(8,32), Linear(32,32), Linear(32,feats).
    p["wd1"], p["bd1"] = lin(next(k), N_LATENT, N_HIDDEN)
    p["wd2"], p["bd2"] = lin(next(k), N_HIDDEN, N_HIDDEN)
    p["wd3"], p["bd3"] = lin(next(k), N_HIDDEN, feats)
    # PReLU slopes (nn.PReLU default init = 0.25), one scalar per PReLU.
    p["prelu"] = jnp.full((4,), 0.25, jnp.float32)
    return p


def pack_params(p, feats):
    """Fuse GRU gates, fold zero-hidden terms, and pack everything into 2 slabs."""
    f32 = jnp.float32
    bf16 = jnp.bfloat16
    H = N_HIDDEN
    XW = _ru(feats + N_LATENT, 128)          # lanes of the streamed x|eps slab
    WW = max(128, _ru(feats, 128))           # lane width of the resident slabs

    def place(w, rows):
        blk = jnp.zeros((rows, WW), f32)
        return blk.at[:w.shape[0], :w.shape[1]].set(w.astype(f32))

    # Fused GRU input weights, gate order r|z|n, lanes 96:128 left zero.
    wf0 = jnp.concatenate([p["wih0"][0], p["wih0"][1], p["wih0"][2]], axis=1)
    wf1 = jnp.concatenate([p["wih1"][0], p["wih1"][1], p["wih1"][2]], axis=1)

    wslab = jnp.concatenate([
        place(wf0, XW),          # rows 0       : XW       GRU L0 (rows feats.. zero)
        place(wf1, H),           # rows XW      : XW+32    GRU L1
        place(p["we1"], H),      # rows XW+32   : XW+64
        place(p["we2"], H),      # rows XW+64   : XW+96
        place(p["we3"], H),      # rows XW+96   : XW+128   (32,16)
        place(p["wd1"], 16),     # rows XW+128  : XW+144   (8,32) K-padded to 16
        place(p["wd2"], H),      # rows XW+144  : XW+176
        place(p["wd3"], H),      # rows XW+176  : XW+208   (32,feats)
    ], axis=0).astype(bf16)

    def gru_bias(bih, bhh):
        # [bir+bhr | biz+bhz | bin | bhn]  (valid because h0 == 0)
        return jnp.concatenate([bih[0] + bhh[0], bih[1] + bhh[1], bih[2], bhh[2]])

    def bias_row(vec, slope=None):
        r = jnp.zeros((WW,), f32).at[:vec.shape[0]].set(vec)
        if slope is not None:
            # PReLU slope broadcast into spare lanes 32:64 of this bias row.
            r = r.at[32:64].set(jnp.full((32,), slope, f32))
        return r

    a = p["prelu"]
    bslab = jnp.stack([
        bias_row(gru_bias(p["bih0"], p["bhh0"])),
        bias_row(gru_bias(p["bih1"], p["bhh1"])),
        bias_row(p["be1"][0], a[0]),
        bias_row(p["be2"][0], a[1]),
        bias_row(p["be3"][0]),
        bias_row(p["bd1"][0], a[2]),
        bias_row(p["bd2"][0], a[3]),
        bias_row(p["bd3"][0]),
    ], axis=0)                                                # (8, WW) f32

    return dict(wslab=wslab, bslab=bslab, x_width=XW, lane_width=WW, feats=feats)


def omni_anomaly_forward_batched(x, eps, packed, *, batch_tile=None):
    """x: (B, feats) independent samples; eps: (B, n_latent) reparam noise."""
    x = jnp.asarray(x, jnp.float32)
    eps = jnp.asarray(eps, jnp.float32)
    B, feats = x.shape
    XW = packed["x_width"]
    WW = packed["lane_width"]
    RW = packed["wslab"].shape[0]
    used = feats + 2 * N_LATENT + 2 * N_HIDDEN
    OW = _ru(used, 128)

    if batch_tile is None:
        batch_tile = 256 if B >= 256 else _ru(B, 8)   # 256 fills v6e/v7x MXU rows
    TB = max(8, _ru(min(batch_tile, 256), 8))
    B_pad = _ru(B, TB)

    # Pack x and eps into one lane-dense streamed slab (weight rows for the eps
    # lanes are zero, so eps cannot leak into the GRU matmul).
    xeps = jnp.zeros((B_pad, XW), jnp.float32)
    xeps = xeps.at[:B, :feats].set(x)
    xeps = xeps.at[:B, feats:feats + N_LATENT].set(eps)

    out = pl.pallas_call(
        make_omni_kernel(feats, XW, OW),
        out_shape=jax.ShapeDtypeStruct((B_pad, OW), jnp.float32),
        grid=(B_pad // TB,),
        in_specs=[
            pl.BlockSpec((TB, XW), lambda i: (i, 0)),   # streamed per batch tile
            pl.BlockSpec((RW, WW), lambda i: (0, 0)),   # weights: VMEM-resident
            pl.BlockSpec((8, WW), lambda i: (0, 0)),    # biases + PReLU: resident
        ],
        out_specs=pl.BlockSpec((TB, OW), lambda i: (i, 0)),
        compiler_params=pltpu.CompilerParams(dimension_semantics=("parallel",)),
    )(xeps, packed["wslab"], packed["bslab"])

    recon = out[:B, 0:feats]
    mu = out[:B, feats:feats + N_LATENT]
    logvar = out[:B, feats + N_LATENT:feats + 2 * N_LATENT]
    h1 = out[:B, feats + 2 * N_LATENT:feats + 2 * N_LATENT + N_HIDDEN]
    h2 = out[:B, feats + 2 * N_LATENT + N_HIDDEN:used]
    hidden = jnp.stack([h1, h2], axis=0)                 # (2, B, 32)
    return recon, mu, logvar, hidden


def omni_anomaly_forward(x, eps, packed):
    """Single-sample path matching the PyTorch return signature."""
    recon, mu, logvar, hidden = omni_anomaly_forward_batched(
        x.reshape(1, -1), eps.reshape(1, -1), packed)
    return recon[0], mu[0], logvar[0], hidden            # hidden (2, 1, 32)


def reference_forward(x, eps, p):
    """Pure-JAX f32 reference of the same forward (hidden=None path)."""
    def gru_layer(inp, wih, bih, bhh):
        r = jax.nn.sigmoid(inp @ wih[0] + bih[0] + bhh[0])
        z = jax.nn.sigmoid(inp @ wih[1] + bih[1] + bhh[1])
        n = jnp.tanh(inp @ wih[2] + bih[2] + r * bhh[2])
        return (1.0 - z) * n

    def prelu(v, a):
        return jnp.where(v >= 0.0, v, a * v)

    h1 = gru_layer(x, p["wih0"], p["bih0"], p["bhh0"])
    h2 = gru_layer(h1, p["wih1"], p["bih1"], p["bhh1"])
    e1 = prelu(h2 @ p["we1"] + p["be1"], p["prelu"][0])
    e2 = prelu(e1 @ p["we2"] + p["be2"], p["prelu"][1])
    lat = e2 @ p["we3"] + p["be3"]
    mu, logvar = lat[:, :N_LATENT], lat[:, N_LATENT:2 * N_LATENT]
    z_lat = mu + eps * jnp.exp(0.5 * logvar)
    d1 = prelu(z_lat @ p["wd1"] + p["bd1"], p["prelu"][2])
    d2 = prelu(d1 @ p["wd2"] + p["bd2"], p["prelu"][3])
    recon = jax.nn.sigmoid(d2 @ p["wd3"] + p["bd3"])
    return recon, mu, logvar, jnp.stack([h1, h2], axis=0)


if __name__ == "__main__":
    feats = 16
    batch = 16
    key = jax.random.PRNGKey(0)
    k_param, k_x, k_eps = jax.random.split(key, 3)

    params = init_params(k_param, feats)
    packed = pack_params(params, feats)

    x = jax.random.uniform(k_x, (batch, feats), jnp.float32)
    eps = jax.random.normal(k_eps, (batch, N_LATENT), jnp.float32)

    # Batched path; batch_tile=8 -> 2 grid steps (exercises resident weights).
    recon, mu, logvar, hidden = omni_anomaly_forward_batched(
        x, eps, packed, batch_tile=8)
    jax.block_until_ready((recon, mu, logvar, hidden))

    assert recon.shape == (batch, feats)
    assert mu.shape == (batch, N_LATENT)
    assert logvar.shape == (batch, N_LATENT)
    assert hidden.shape == (2, batch, N_HIDDEN)
    assert bool(jnp.all((recon >= 0.0) & (recon <= 1.0)))   # sigmoid range
    assert bool(jnp.all(jnp.isfinite(hidden)))

    # Tolerance check against the f32 reference (bf16 MXU inputs in the kernel).
    r_ref, m_ref, lv_ref, h_ref = reference_forward(x, eps, params)
    tol = 5e-2
    assert float(jnp.max(jnp.abs(recon - r_ref))) < tol
    assert float(jnp.max(jnp.abs(mu - m_ref))) < tol
    assert float(jnp.max(jnp.abs(logvar - lv_ref))) < tol
    assert float(jnp.max(jnp.abs(hidden - h_ref))) < tol

    # Single-sample call matching the PyTorch forward() signature.
    r1, m1, l1, hid1 = omni_anomaly_forward(x[0], eps[0], packed)
    jax.block_until_ready((r1, m1, l1, hid1))
    assert r1.shape == (feats,) and m1.shape == (N_LATENT,)
    assert l1.shape == (N_LATENT,) and hid1.shape == (2, 1, N_HIDDEN)

    print("KERNEL_OK")
</pallas_src>

<mosaic_0001>
module attributes {stable_mosaic.version = 11 : i64} {
  func.func @kernel(%arg0: i32, %arg1: memref<8x128xf32, #tpu.memory_space<vmem>>, %arg2: memref<336x128xbf16, #tpu.memory_space<vmem>>, %arg3: memref<8x128xf32, #tpu.memory_space<vmem>>, %arg4: memref<8x128xf32, #tpu.memory_space<vmem>>) attributes {dimension_semantics = [#tpu.dimension_semantics<parallel>], iteration_bounds = array<i64: 2>, scalar_prefetch = 0 : i64, scratch_operands = 0 : i64, tpu.core_type = #tpu.core_type<tc>, window_params = [{transform_indices = @transform_0, window_bounds = array<i64: 8, 128>}, {pipeline_mode = #tpu.pipeline_mode<synchronous>, transform_indices = @transform_1, window_bounds = array<i64: 336, 128>}, {pipeline_mode = #tpu.pipeline_mode<synchronous>, transform_indices = @transform_2, window_bounds = array<i64: 8, 128>}, {transform_indices = @transform_3, window_bounds = array<i64: 8, 128>}]} {
    %c0 = arith.constant 0 : index
    %c0_0 = arith.constant 0 : index
    %0 = vector.load %arg1[%c0, %c0_0] : memref<8x128xf32, #tpu.memory_space<vmem>>, vector<8x128xf32>
    %c0_1 = arith.constant 0 : index
    %c0_2 = arith.constant 0 : index
    %1 = vector.load %arg3[%c0_1, %c0_2] : memref<8x128xf32, #tpu.memory_space<vmem>>, vector<8x128xf32>
    %c0_3 = arith.constant 0 : index
    %c0_4 = arith.constant 0 : index
    %2 = vector.load %arg2[%c0_3, %c0_4] : memref<336x128xbf16, #tpu.memory_space<vmem>>, vector<128x128xbf16>
    %3 = vector.extract_strided_slice %1 {offsets = [0, 0], sizes = [1, 128], strides = [1, 1]} : vector<8x128xf32> to vector<1x128xf32>
    %4 = arith.truncf %0 : vector<8x128xf32> to vector<8x128xbf16>
    %cst = arith.constant dense<0.000000e+00> : vector<8x128xf32>
    %5 = tpu.matmul %4, %2, %cst {dimension_numbers = #tpu.dot_dimension_numbers<[1], [0], [0], [1], [0, 0, 1, 1], [], []>} : vector<8x128xbf16>, vector<128x128xbf16>, vector<8x128xf32> -> vector<8x128xf32>
    %6 = vector.broadcast %3 : vector<1x128xf32> to vector<8x128xf32>
    %7 = arith.addf %5, %6 : vector<8x128xf32>
    %8 = vector.extract_strided_slice %7 {offsets = [0, 0], sizes = [8, 32], strides = [1, 1]} : vector<8x128xf32> to vector<8x32xf32>
    %9 = arith.negf %8 : vector<8x32xf32>
    %10 = math.exp %9 : vector<8x32xf32>
    %cst_5 = arith.constant 1.000000e+00 : f32
    %11 = vector.broadcast %cst_5 : f32 to vector<8x32xf32>
    %12 = arith.addf %11, %10 : vector<8x32xf32>
    %13 = arith.divf %11, %12 : vector<8x32xf32>
    %14 = vector.extract_strided_slice %7 {offsets = [0, 32], sizes = [8, 32], strides = [1, 1]} : vector<8x128xf32> to vector<8x32xf32>
    %15 = arith.negf %14 : vector<8x32xf32>
    %16 = math.exp %15 : vector<8x32xf32>
    %cst_6 = arith.constant 1.000000e+00 : f32
    %17 = vector.broadcast %cst_6 : f32 to vector<8x32xf32>
    %18 = arith.addf %17, %16 : vector<8x32xf32>
    %19 = arith.divf %17, %18 : vector<8x32xf32>
    %20 = vector.extract_strided_slice %7 {offsets = [0, 64], sizes = [8, 32], strides = [1, 1]} : vector<8x128xf32> to vector<8x32xf32>
    %21 = vector.extract_strided_slice %7 {offsets = [0, 96], sizes = [8, 32], strides = [1, 1]} : vector<8x128xf32> to vector<8x32xf32>
    %22 = arith.mulf %13, %21 : vector<8x32xf32>
    %23 = arith.addf %20, %22 : vector<8x32xf32>
    %24 = math.tanh %23 : vector<8x32xf32>
    %cst_7 = arith.constant 1.000000e+00 : f32
    %25 = vector.broadcast %cst_7 : f32 to vector<8x32xf32>
    %26 = arith.subf %25, %19 : vector<8x32xf32>
    %27 = arith.mulf %26, %24 : vector<8x32xf32>
    %c128 = arith.constant 128 : index
    %c0_8 = arith.constant 0 : index
    %28 = vector.load %arg2[%c128, %c0_8] : memref<336x128xbf16, #tpu.memory_space<vmem>>, vector<32x128xbf16>
    %29 = vector.extract_strided_slice %1 {offsets = [1, 0], sizes = [1, 128], strides = [1, 1]} : vector<8x128xf32> to vector<1x128xf32>
    %30 = arith.truncf %27 : vector<8x32xf32> to vector<8x32xbf16>
    %cst_9 = arith.constant dense<0.000000e+00> : vector<8x128xf32>
    %31 = tpu.matmul %30, %28, %cst_9 {dimension_numbers = #tpu.dot_dimension_numbers<[1], [0], [0], [1], [0, 0, 1, 1], [], []>} : vector<8x32xbf16>, vector<32x128xbf16>, vector<8x128xf32> -> vector<8x128xf32>
    %32 = vector.broadcast %29 : vector<1x128xf32> to vector<8x128xf32>
    %33 = arith.addf %31, %32 : vector<8x128xf32>
    %34 = vector.extract_strided_slice %33 {offsets = [0, 0], sizes = [8, 32], strides = [1, 1]} : vector<8x128xf32> to vector<8x32xf32>
    %35 = arith.negf %34 : vector<8x32xf32>
    %36 = math.exp %35 : vector<8x32xf32>
    %cst_10 = arith.constant 1.000000e+00 : f32
    %37 = vector.broadcast %cst_10 : f32 to vector<8x32xf32>
    %38 = arith.addf %37, %36 : vector<8x32xf32>
    %39 = arith.divf %37, %38 : vector<8x32xf32>
    %40 = vector.extract_strided_slice %33 {offsets = [0, 32], sizes = [8, 32], strides = [1, 1]} : vector<8x128xf32> to vector<8x32xf32>
    %41 = arith.negf %40 : vector<8x32xf32>
    %42 = math.exp %41 : vector<8x32xf32>
    %cst_11 = arith.constant 1.000000e+00 : f32
    %43 = vector.broadcast %cst_11 : f32 to vector<8x32xf32>
    %44 = arith.addf %43, %42 : vector<8x32xf32>
    %45 = arith.divf %43, %44 : vector<8x32xf32>
    %46 = vector.extract_strided_slice %33 {offsets = [0, 64], sizes = [8, 32], strides = [1, 1]} : vector<8x128xf32> to vector<8x32xf32>
    %47 = vector.extract_strided_slice %33 {offsets = [0, 96], sizes = [8, 32], strides = [1, 1]} : vector<8x128xf32> to vector<8x32xf32>
    %48 = arith.mulf %39, %47 : vector<8x32xf32>
    %49 = arith.addf %46, %48 : vector<8x32xf32>
    %50 = math.tanh %49 : vector<8x32xf32>
    %cst_12 = arith.constant 1.000000e+00 : f32
    %51 = vector.broadcast %cst_12 : f32 to vector<8x32xf32>
    %52 = arith.subf %51, %45 : vector<8x32xf32>
    %53 = arith.mulf %52, %50 : vector<8x32xf32>
    %c160 = arith.constant 160 : index
    %c0_13 = arith.constant 0 : index
    %54 = vector.load %arg2[%c160, %c0_13] : memref<336x128xbf16, #tpu.memory_space<vmem>>, vector<32x128xbf16>
    %55 = arith.truncf %53 : vector<8x32xf32> to vector<8x32xbf16>
    %cst_14 = arith.constant dense<0.000000e+00> : vector<8x128xf32>
    %56 = tpu.matmul %55, %54, %cst_14 {dimension_numbers = #tpu.dot_dimension_numbers<[1], [0], [0], [1], [0, 0, 1, 1], [], []>} : vector<8x32xbf16>, vector<32x128xbf16>, vector<8x128xf32> -> vector<8x128xf32>
    %57 = vector.extract_strided_slice %56 {offsets = [0, 0], sizes = [8, 32], strides = [1, 1]} : vector<8x128xf32> to vector<8x32xf32>
    %58 = vector.extract_strided_slice %1 {offsets = [2, 0], sizes = [1, 32], strides = [1, 1]} : vector<8x128xf32> to vector<1x32xf32>
    %59 = vector.broadcast %58 : vector<1x32xf32> to vector<8x32xf32>
    %60 = arith.addf %57, %59 : vector<8x32xf32>
    %61 = vector.extract_strided_slice %1 {offsets = [2, 32], sizes = [1, 32], strides = [1, 1]} : vector<8x128xf32> to vector<1x32xf32>
    %cst_15 = arith.constant 0.000000e+00 : f32
    %62 = vector.broadcast %cst_15 : f32 to vector<8x32xf32>
    %63 = arith.cmpf oge, %60, %62 : vector<8x32xf32>
    %64 = vector.broadcast %61 : vector<1x32xf32> to vector<8x32xf32>
    %65 = arith.mulf %64, %60 : vector<8x32xf32>
    %66 = arith.select %63, %60, %65 : vector<8x32xi1>, vector<8x32xf32>
    %c192 = arith.constant 192 : index
    %c0_16 = arith.constant 0 : index
    %67 = vector.load %arg2[%c192, %c0_16] : memref<336x128xbf16, #tpu.memory_space<vmem>>, vector<32x128xbf16>
    %68 = arith.truncf %66 : vector<8x32xf32> to vector<8x32xbf16>
    %cst_17 = arith.constant dense<0.000000e+00> : vector<8x128xf32>
    %69 = tpu.matmul %68, %67, %cst_17 {dimension_numbers = #tpu.dot_dimension_numbers<[1], [0], [0], [1], [0, 0, 1, 1], [], []>} : vector<8x32xbf16>, vector<32x128xbf16>, vector<8x128xf32> -> vector<8x128xf32>
    %70 = vector.extract_strided_slice %69 {offsets = [0, 0], sizes = [8, 32], strides = [1, 1]} : vector<8x128xf32> to vector<8x32xf32>
    %71 = vector.extract_strided_slice %1 {offsets = [3, 0], sizes = [1, 32], strides = [1, 1]} : vector<8x128xf32> to vector<1x32xf32>
    %72 = vector.broadcast %71 : vector<1x32xf32> to vector<8x32xf32>
    %73 = arith.addf %70, %72 : vector<8x32xf32>
    %74 = vector.extract_strided_slice %1 {offsets = [3, 32], sizes = [1, 32], strides = [1, 1]} : vector<8x128xf32> to vector<1x32xf32>
    %cst_18 = arith.constant 0.000000e+00 : f32
    %75 = vector.broadcast %cst_18 : f32 to vector<8x32xf32>
    %76 = arith.cmpf oge, %73, %75 : vector<8x32xf32>
    %77 = vector.broadcast %74 : vector<1x32xf32> to vector<8x32xf32>
    %78 = arith.mulf %77, %73 : vector<8x32xf32>
    %79 = arith.select %76, %73, %78 : vector<8x32xi1>, vector<8x32xf32>
    %c224 = arith.constant 224 : index
    %c0_19 = arith.constant 0 : index
    %80 = vector.load %arg2[%c224, %c0_19] : memref<336x128xbf16, #tpu.memory_space<vmem>>, vector<32x128xbf16>
    %81 = arith.truncf %79 : vector<8x32xf32> to vector<8x32xbf16>
    %cst_20 = arith.constant dense<0.000000e+00> : vector<8x128xf32>
    %82 = tpu.matmul %81, %80, %cst_20 {dimension_numbers = #tpu.dot_dimension_numbers<[1], [0], [0], [1], [0, 0, 1, 1], [], []>} : vector<8x32xbf16>, vector<32x128xbf16>, vector<8x128xf32> -> vector<8x128xf32>
    %83 = vector.extract_strided_slice %82 {offsets = [0, 0], sizes = [8, 16], strides = [1, 1]} : vector<8x128xf32> to vector<8x16xf32>
    %84 = vector.extract_strided_slice %1 {offsets = [4, 0], sizes = [1, 16], strides = [1, 1]} : vector<8x128xf32> to vector<1x16xf32>
    %85 = vector.broadcast %84 : vector<1x16xf32> to vector<8x16xf32>
    %86 = arith.addf %83, %85 : vector<8x16xf32>
    %87 = vector.extract_strided_slice %86 {offsets = [0, 0], sizes = [8, 8], strides = [1, 1]} : vector<8x16xf32> to vector<8x8xf32>
    %88 = vector.extract_strided_slice %86 {offsets = [0, 8], sizes = [8, 8], strides = [1, 1]} : vector<8x16xf32> to vector<8x8xf32>
    %89 = vector.extract_strided_slice %0 {offsets = [0, 16], sizes = [8, 8], strides = [1, 1]} : vector<8x128xf32> to vector<8x8xf32>
    %cst_21 = arith.constant 5.000000e-01 : f32
    %90 = vector.broadcast %cst_21 : f32 to vector<8x8xf32>
    %91 = arith.mulf %90, %88 : vector<8x8xf32>
    %92 = math.exp %91 : vector<8x8xf32>
    %93 = arith.mulf %89, %92 : vector<8x8xf32>
    %94 = arith.addf %87, %93 : vector<8x8xf32>
    %cst_22 = arith.constant 0.000000e+00 : f32
    %95 = vector.broadcast %cst_22 : f32 to vector<8x8xf32>
    %96 = tpu.concatenate %94, %95 in 1 : vector<8x8xf32>, vector<8x8xf32> -> vector<8x16xf32>
    %c256 = arith.constant 256 : index
    %c0_23 = arith.constant 0 : index
    %97 = vector.load %arg2[%c256, %c0_23] : memref<336x128xbf16, #tpu.memory_space<vmem>>, vector<16x128xbf16>
    %98 = arith.truncf %96 : vector<8x16xf32> to vector<8x16xbf16>
    %cst_24 = arith.constant dense<0.000000e+00> : vector<8x128xf32>
    %99 = tpu.matmul %98, %97, %cst_24 {dimension_numbers = #tpu.dot_dimension_numbers<[1], [0], [0], [1], [0, 0, 1, 1], [], []>} : vector<8x16xbf16>, vector<16x128xbf16>, vector<8x128xf32> -> vector<8x128xf32>
    %100 = vector.extract_strided_slice %99 {offsets = [0, 0], sizes = [8, 32], strides = [1, 1]} : vector<8x128xf32> to vector<8x32xf32>
    %101 = vector.extract_strided_slice %1 {offsets = [5, 0], sizes = [1, 32], strides = [1, 1]} : vector<8x128xf32> to vector<1x32xf32>
    %102 = vector.broadcast %101 : vector<1x32xf32> to vector<8x32xf32>
    %103 = arith.addf %100, %102 : vector<8x32xf32>
    %104 = vector.extract_strided_slice %1 {offsets = [5, 32], sizes = [1, 32], strides = [1, 1]} : vector<8x128xf32> to vector<1x32xf32>
    %cst_25 = arith.constant 0.000000e+00 : f32
    %105 = vector.broadcast %cst_25 : f32 to vector<8x32xf32>
    %106 = arith.cmpf oge, %103, %105 : vector<8x32xf32>
    %107 = vector.broadcast %104 : vector<1x32xf32> to vector<8x32xf32>
    %108 = arith.mulf %107, %103 : vector<8x32xf32>
    %109 = arith.select %106, %103, %108 : vector<8x32xi1>, vector<8x32xf32>
    %c272 = arith.constant 272 : index
    %c0_26 = arith.constant 0 : index
    %110 = vector.load %arg2[%c272, %c0_26] : memref<336x128xbf16, #tpu.memory_space<vmem>>, vector<32x128xbf16>
    %111 = arith.truncf %109 : vector<8x32xf32> to vector<8x32xbf16>
    %cst_27 = arith.constant dense<0.000000e+00> : vector<8x128xf32>
    %112 = tpu.matmul %111, %110, %cst_27 {dimension_numbers = #tpu.dot_dimension_numbers<[1], [0], [0], [1], [0, 0, 1, 1], [], []>} : vector<8x32xbf16>, vector<32x128xbf16>, vector<8x128xf32> -> vector<8x128xf32>
    %113 = vector.extract_strided_slice %112 {offsets = [0, 0], sizes = [8, 32], strides = [1, 1]} : vector<8x128xf32> to vector<8x32xf32>
    %114 = vector.extract_strided_slice %1 {offsets = [6, 0], sizes = [1, 32], strides = [1, 1]} : vector<8x128xf32> to vector<1x32xf32>
    %115 = vector.broadcast %114 : vector<1x32xf32> to vector<8x32xf32>
    %116 = arith.addf %113, %115 : vector<8x32xf32>
    %117 = vector.extract_strided_slice %1 {offsets = [6, 32], sizes = [1, 32], strides = [1, 1]} : vector<8x128xf32> to vector<1x32xf32>
    %cst_28 = arith.constant 0.000000e+00 : f32
    %118 = vector.broadcast %cst_28 : f32 to vector<8x32xf32>
    %119 = arith.cmpf oge, %116, %118 : vector<8x32xf32>
    %120 = vector.broadcast %117 : vector<1x32xf32> to vector<8x32xf32>
    %121 = arith.mulf %120, %116 : vector<8x32xf32>
    %122 = arith.select %119, %116, %121 : vector<8x32xi1>, vector<8x32xf32>
    %c304 = arith.constant 304 : index
    %c0_29 = arith.constant 0 : index
    %123 = vector.load %arg2[%c304, %c0_29] : memref<336x128xbf16, #tpu.memory_space<vmem>>, vector<32x128xbf16>
    %124 = arith.truncf %122 : vector<8x32xf32> to vector<8x32xbf16>
    %cst_30 = arith.constant dense<0.000000e+00> : vector<8x128xf32>
    %125 = tpu.matmul %124, %123, %cst_30 {dimension_numbers = #tpu.dot_dimension_numbers<[1], [0], [0], [1], [0, 0, 1, 1], [], []>} : vector<8x32xbf16>, vector<32x128xbf16>, vector<8x128xf32> -> vector<8x128xf32>
    %126 = vector.extract_strided_slice %125 {offsets = [0, 0], sizes = [8, 16], strides = [1, 1]} : vector<8x128xf32> to vector<8x16xf32>
    %127 = vector.extract_strided_slice %1 {offsets = [7, 0], sizes = [1, 16], strides = [1, 1]} : vector<8x128xf32> to vector<1x16xf32>
    %128 = vector.broadcast %127 : vector<1x16xf32> to vector<8x16xf32>
    %129 = arith.addf %126, %128 : vector<8x16xf32>
    %130 = arith.negf %129 : vector<8x16xf32>
    %131 = math.exp %130 : vector<8x16xf32>
    %cst_31 = arith.constant 1.000000e+00 : f32
    %132 = vector.broadcast %cst_31 : f32 to vector<8x16xf32>
    %133 = arith.addf %132, %131 : vector<8x16xf32>
    %134 = arith.divf %132, %133 : vector<8x16xf32>
    %cst_32 = arith.constant 0.000000e+00 : f32
    %135 = vector.broadcast %cst_32 : f32 to vector<8x32xf32>
    %136 = tpu.concatenate %134, %87, %88, %27, %53, %135 in 1 : vector<8x16xf32>, vector<8x8xf32>, vector<8x8xf32>, vector<8x32xf32>, vector<8x32xf32>, vector<8x32xf32> -> vector<8x128xf32>
    %c0_33 = arith.constant 0 : index
    %c0_34 = arith.constant 0 : index
    %137 = vector.load %arg4[%c0_33, %c0_34] : memref<8x128xf32, #tpu.memory_space<vmem>>, vector<8x128xf32>
    tpu.vector_store %arg4[%c0_33, %c0_34], %136 {strides = array<i32>} : memref<8x128xf32, #tpu.memory_space<vmem>>, vector<8x128xf32>,
    return
  }
  func.func @transform_0(%arg0: i32) -> (i32, i32) {
    %c0_i32 = arith.constant 0 : i32
    %c0_i32_0 = arith.constant 0 : i32
    return %arg0, %c0_i32 : i32, i32
  }
  func.func @transform_1(%arg0: i32) -> (i32, i32) {
    %c0_i32 = arith.constant 0 : i32
    %c0_i32_0 = arith.constant 0 : i32
    %c0_i32_1 = arith.constant 0 : i32
    return %c0_i32, %c0_i32_0 : i32, i32
  }
  func.func @transform_2(%arg0: i32) -> (i32, i32) {
    %c0_i32 = arith.constant 0 : i32
    %c0_i32_0 = arith.constant 0 : i32
    %c0_i32_1 = arith.constant 0 : i32
    return %c0_i32, %c0_i32_0 : i32, i32
  }
  func.func @transform_3(%arg0: i32) -> (i32, i32) {
    %c0_i32 = arith.constant 0 : i32
    %c0_i32_0 = arith.constant 0 : i32
    return %arg0, %c0_i32 : i32, i32
  }
}

</mosaic_0001>

<llo_original>
// kernel: tpu_custom_call.1
$region0: #{tpu_custom_call.1}
  #allocation0 [shape = 'u32[]', space=smem, size = 0x4, offset = 0x4, fixed_abs, tag = 'smem constant byte address 0x4 - core index']
  #allocation1 [shape = 'u32[144,128]{1,0:T(1,128)}', space=vmem, size = 0x12000, scoped, tag = 'internal scratch']
  %s0 = inlined_call_operand.hbm [shape: f32[16,128], index: 0, kind: input, shape index: {}]
  %s1 = inlined_call_operand.hbm [shape: bf16[336,128], index: 1, kind: input, shape index: {}]
  %s2 = inlined_call_operand.hbm [shape: f32[8,128], index: 2, kind: input, shape index: {}]
  %s3 = inlined_call_operand.hbm [shape: f32[16,128], index: 3, kind: output, shape index: {}]
  %s4 = sld [smem:[#allocation0]]
  $region57: #{tpu_custom_call.1} parent=0
    _
  %s6 = ssub.s32 1, %s4
  %s7 = scalar_select 0, %s6, %s4
  $region1: #{tpu_custom_call.1} parent=0
    #allocation2 [shape = 'u8[8192]{0}', space=vmem, size = 0x2000, scoped, tag = 'input window, operand 0']
    #allocation3 [shape = 's32[2]{0}', space=sflag, size = 0x8, scoped, tag = 'scoped memory for tpu_custom_call.1']
    #allocation4 [shape = 's32[2]{0}', space=sflag, size = 0x8, scoped, tag = 'scoped memory for tpu_custom_call.1']
    #allocation5 [shape = 'u8[86016]{0}', space=vmem, size = 0x15000, scoped, tag = 'input window, operand 1, single buffered']
    #allocation6 [shape = 's32[1]{0}', space=sflag, size = 0x4, scoped, tag = 'scoped memory for tpu_custom_call.1']
    #allocation7 [shape = 'u8[4096]{0}', space=vmem, size = 0x1000, scoped, tag = 'input window, operand 2, single buffered']
    #allocation8 [shape = 'u8[8192]{0}', space=vmem, size = 0x2000, scoped, tag = 'output window, operand 0']
    %8 = vsyncpa [#allocation3], 0
    %s9 = scalar_lea.sflag [#allocation3], 1
    %10 = vsyncpa %s9, 0
    %11 = vsyncpa [#allocation6], 0
    %12 = vsyncpa [#allocation4], 0
    %s13 = scalar_lea.sflag [#allocation4], 1
    %14 = vsyncpa %s13, 0
    loop: start=0, step=1, limit=4
    $region2: #{tpu_custom_call.1} parent=1 // loop_pre_header
      _
    $region3: #{tpu_custom_call.1} parent=1 // loop_header
      %s16 = sphi 0, %s20
      %p17 = scmp.ge.s32.totalorder %s16, 4
      %s26 = sphi 0, %s28
      %s29 = sphi 0, %s26
      %s30 = sphi 0, %s29
      %s46 = sphi 0, %s30
      %s50 = sphi 0, %s50
      %s52 = sphi 0, %s50
      %s53 = sphi 0, %s52
      %s67 = sphi 0, %s53
      %s71 = sphi 0, %s71
      %s73 = sphi 0, %s71
      %s74 = sphi 0, %s73
      %s88 = sphi 0, %s74
      %s94 = sphi 0, %s96
      %s97 = sphi 0, %s94
      %s98 = sphi 0, %s97
      %s114 = sphi 0, %s98
    $region4: #{tpu_custom_call.1} parent=1 // loop_header_branch
      %19 = sbr.rel (%p17) target = $region8
    $region5: #{tpu_custom_call.1} parent=1 // loop_body
      %s21 = ssub.s32 %s16, 1
      %s22 = ssub.s32 %s16, 2
      %s23 = sadd.s32 %s16, 1
      %s24 = ssub.s32 %s16, %s23
      %p25 = scmp.eq.s32.totalorder %s24, 0
      %s27 = sadd.s32 %s26, 1
      %s28 = scalar_select %p25, %s26, %s27
      %p31 = pneg %p25
      %p32 = scmp.eq.s32.totalorder %s16, 1
      %p33 = por %p31, %p32
      %p34 = scmp.ne.s32.totalorder %s26, %s29
      %p35 = scmp.eq.s32.totalorder %s16, 0
      %p36 = por %p34, %p35
      %p37 = scmp.ne.s32.totalorder %s26, %s29
      %p38 = scmp.eq.s32.totalorder %s21, 1
      %p39 = por %p37, %p38
      %p40 = scmp.ne.s32.totalorder %s29, %s30
      %p41 = scmp.eq.s32.totalorder %s21, 0
      %p42 = por %p40, %p41
      %p43 = scmp.ne.s32.totalorder %s29, %s30
      %p44 = scmp.eq.s32.totalorder %s22, 1
      %p45 = por %p43, %p44
      %p47 = scmp.ne.s32.totalorder %s30, %s46
      %p48 = scmp.eq.s32.totalorder %s22, 0
      %p49 = por %p47, %p48
      %s51 = sadd.s32 %s50, 1
      %p54 = scmp.eq.s32.totalorder %s16, 1
      %p55 = scmp.ne.s32.totalorder %s50, %s52
      %p56 = scmp.eq.s32.totalorder %s16, 0
      %p57 = por %p55, %p56
      %p58 = scmp.ne.s32.totalorder %s50, %s52
      %p59 = scmp.eq.s32.totalorder %s21, 1
      %p60 = por %p58, %p59
      %p61 = scmp.ne.s32.totalorder %s52, %s53
      %p62 = scmp.eq.s32.totalorder %s21, 0
      %p63 = por %p61, %p62
      %p64 = scmp.ne.s32.totalorder %s52, %s53
      %p65 = scmp.eq.s32.totalorder %s22, 1
      %p66 = por %p64, %p65
      %p68 = scmp.ne.s32.totalorder %s53, %s67
      %p69 = scmp.eq.s32.totalorder %s22, 0
      %p70 = por %p68, %p69
      %s72 = sadd.s32 %s71, 1
      %p75 = scmp.eq.s32.totalorder %s16, 1
      %p76 = scmp.ne.s32.totalorder %s71, %s73
      %p77 = scmp.eq.s32.totalorder %s16, 0
      %p78 = por %p76, %p77
      %p79 = scmp.ne.s32.totalorder %s71, %s73
      %p80 = scmp.eq.s32.totalorder %s21, 1
      %p81 = por %p79, %p80
      %p82 = scmp.ne.s32.totalorder %s73, %s74
      %p83 = scmp.eq.s32.totalorder %s21, 0
      %p84 = por %p82, %p83
      %p85 = scmp.ne.s32.totalorder %s73, %s74
      %p86 = scmp.eq.s32.totalorder %s22, 1
      %p87 = por %p85, %p86
      %p89 = scmp.ne.s32.totalorder %s74, %s88
      %p90 = scmp.eq.s32.totalorder %s22, 0
      %p91 = por %p89, %p90
      %s92 = ssub.s32 %s16, %s23
      %p93 = scmp.eq.s32.totalorder %s92, 0
      %s95 = sadd.s32 %s94, 1
      %s96 = scalar_select %p93, %s94, %s95
      %p99 = pneg %p93
      %p100 = scmp.eq.s32.totalorder %s16, 1
      %p101 = por %p99, %p100
      %p102 = scmp.ne.s32.totalorder %s94, %s97
      %p103 = scmp.eq.s32.totalorder %s16, 0
      %p104 = por %p102, %p103
      %p105 = scmp.ne.s32.totalorder %s94, %s97
      %p106 = scmp.eq.s32.totalorder %s21, 1
      %p107 = por %p105, %p106
      %p108 = scmp.ne.s32.totalorder %s97, %s98
      %p109 = scmp.eq.s32.totalorder %s21, 0
      %p110 = por %p108, %p109
      %p111 = scmp.ne.s32.totalorder %s97, %s98
      %p112 = scmp.eq.s32.totalorder %s22, 1
      %p113 = por %p111, %p112
      %p115 = scmp.ne.s32.totalorder %s98, %s114
      %p116 = scmp.eq.s32.totalorder %s22, 0
      %p117 = por %p115, %p116
      %p118 = scmp.le.s32.totalorder 1, %s16
      %p119 = scmp.lt.s32.totalorder %s16, 3
      %p120 = pnand %p118, %p119
      %p121 = pneg %p120
      // Predicated region
      $region9: #{tpu_custom_call.1} parent=5 // pred_check
        _
      $region10: #{tpu_custom_call.1} parent=5 // pred_check_branch
        %123 = sbr.rel (%p120) target = $region12
      $region11: #{tpu_custom_call.1} parent=5 // pred_region
        %s124 = ssub.s32 %s16, 1
        // Predicated region
        $region13: #{tpu_custom_call.1} parent=11 // pred_check
          %p125 = pneg %p63
        $region14: #{tpu_custom_call.1} parent=11 // pred_check_branch
          %127 = sbr.rel (%p125) target = $region16
        $region15: #{tpu_custom_call.1} parent=11 // pred_region
          %s129 = ssub.s32 2688, 2688
          %130 = vsyncadd [#allocation6], %s129
          %s131 = sshll.u32 [#allocation5], 4
          %s132 = int_to_ptr.vmem [resolvable:$true] %s131
          %137 = dma.hbm_to_vmem [thread:$0]  %s1, 2688, %s132, [#allocation6], 64, 64, 4
        $region16: #{tpu_custom_call.1} parent=11 // pred_fallthru
          _
        // Predicated region
        $region17: #{tpu_custom_call.1} parent=11 // pred_check
          %p138 = pneg %p84
        $region18: #{tpu_custom_call.1} parent=11 // pred_check_branch
          %140 = sbr.rel (%p138) target = $region20
        $region19: #{tpu_custom_call.1} parent=11 // pred_region
          %s142 = ssub.s32 128, 128
          %143 = vsyncadd [#allocation6], %s142
          %s145 = sshll.u32 [#allocation7], 4
          %s146 = int_to_ptr.vmem [resolvable:$true] %s145
          %148 = dma.hbm_to_vmem [thread:$0]  %s2, 128, %s146, [#allocation6]
        $region20: #{tpu_custom_call.1} parent=11 // pred_fallthru
          _
      $region12: #{tpu_custom_call.1} parent=5 // pred_fallthru
        _
      %p149 = scmp.lt.s32.totalorder %s16, 2
      // Predicated region
      $region21: #{tpu_custom_call.1} parent=5 // pred_check
        %p150 = pneg %p149
      $region22: #{tpu_custom_call.1} parent=5 // pred_check_branch
        %152 = sbr.rel (%p150) target = $region24
      $region23: #{tpu_custom_call.1} parent=5 // pred_region
        // Predicated region
        $region25: #{tpu_custom_call.1} parent=23 // pred_check
          %p153 = pneg %p36
        $region26: #{tpu_custom_call.1} parent=23 // pred_check_branch
          %155 = sbr.rel (%p153) target = $region28
        $region27: #{tpu_custom_call.1} parent=23 // pred_region
          %s156 = sand.u32 %s26, 1
          %s157 = scalar_lea.sflag [#allocation3], %s156
          %s158 = sand.u32 %s26, 1
          %s159 = smul.addr %s158, 8
          %s160 = scalar_lea.vmem [#allocation2], %s159
          %s162 = ssub.s32 128, 128
          %163 = vsyncadd %s157, %s162
          %s164 = smul.addr %s16, 128
          %s165 = scalar_lea.hbm %s0, %s164
          %s167 = sshll.u32 %s160, 4
          %s168 = int_to_ptr.vmem [resolvable:$true] %s167
          %170 = dma.hbm_to_vmem [thread:$0]  %s165, 128, %s168, %s157
        $region28: #{tpu_custom_call.1} parent=23 // pred_fallthru
          _
      $region24: #{tpu_custom_call.1} parent=5 // pred_fallthru
        _
      %p171 = scmp.le.s32.totalorder 1, %s16
      %p172 = scmp.lt.s32.totalorder %s16, 3
      %p173 = pnand %p171, %p172
      %p174 = pneg %p173
      // Predicated region
      $region29: #{tpu_custom_call.1} parent=5 // pred_check
        _
      $region30: #{tpu_custom_call.1} parent=5 // pred_check_branch
        %176 = sbr.rel (%p173) target = $region32
      $region31: #{tpu_custom_call.1} parent=5 // pred_region
        %s177 = ssub.s32 %s16, 1
        %s178 = sand.u32 %s29, 1
        %s179 = scalar_lea.sflag [#allocation3], %s178
        %s180 = sand.u32 %s29, 1
        %s181 = smul.addr %s180, 8
        %s182 = scalar_lea.vmem [#allocation2], %s181
        // Predicated region
        $region33: #{tpu_custom_call.1} parent=31 // pred_check
          %p183 = pneg %p42
        $region34: #{tpu_custom_call.1} parent=31 // pred_check_branch
          %185 = sbr.rel (%p183) target = $region36
        $region35: #{tpu_custom_call.1} parent=31 // pred_region
          %186 = dma.done %s179, 128
        $region36: #{tpu_custom_call.1} parent=31 // pred_fallthru
          _
        // Predicated region
        $region37: #{tpu_custom_call.1} parent=31 // pred_check
          %p187 = pneg %p63
        $region38: #{tpu_custom_call.1} parent=31 // pred_check_branch
          %189 = sbr.rel (%p187) target = $region40
        $region39: #{tpu_custom_call.1} parent=31 // pred_region
          %190 = dma.done [#allocation6], 2688
        $region40: #{tpu_custom_call.1} parent=31 // pred_fallthru
          _
        // Predicated region
        $region41: #{tpu_custom_call.1} parent=31 // pred_check
          %p191 = pneg %p84
        $region42: #{tpu_custom_call.1} parent=31 // pred_check_branch
          %193 = sbr.rel (%p191) target = $region44
        $region43: #{tpu_custom_call.1} parent=31 // pred_region
          %194 = dma.done [#allocation6], 128
        $region44: #{tpu_custom_call.1} parent=31 // pred_fallthru
          _
        %s195 = sand.u32 %s29, 1
        %s196 = scalar_lea.sflag [#allocation3], %s195
        %s197 = sand.u32 %s29, 1
        %s198 = smul.addr %s197, 8
        %s199 = scalar_lea.vmem [#allocation2], %s198
        %p200 = pneg %p42
        %p201 = pneg %p39
        %p202 = pneg %p63
        %p203 = pneg %p60
        %p204 = pneg %p84
        %p205 = pneg %p81
        %p206 = pneg %p110
        %p207 = pneg %p107
        %s208 = sand.u32 %s97, 1
        %s209 = scalar_lea.sflag [#allocation4], %s208
        %s210 = sand.u32 %s97, 1
        %s211 = smul.addr %s210, 8
        %s212 = scalar_lea.vmem [#allocation8], %s211
        %v214 = vld [vmem:[%s182] sm:$0xff]
        %v215 = vld [vmem:[#allocation7] sm:$0xff]
        %v216 = vld [vmem:[#allocation5] sm:$0xf]
        %v217 = vld [vmem:[#allocation5 + $0x4] sm:$0xf]
        %v218 = vld [vmem:[#allocation5 + $0x8] sm:$0xf]
        %v219 = vld [vmem:[#allocation5 + $0xc] sm:$0xf]
        %v220 = vld [vmem:[#allocation5 + $0x10] sm:$0xf]
        %v221 = vld [vmem:[#allocation5 + $0x14] sm:$0xf]
        %v222 = vld [vmem:[#allocation5 + $0x18] sm:$0xf]
        %v223 = vld [vmem:[#allocation5 + $0x1c] sm:$0xf]
        %v224 = vld [vmem:[#allocation5 + $0x20] sm:$0xf]
        %v225 = vld [vmem:[#allocation5 + $0x24] sm:$0xf]
        %v226 = vld [vmem:[#allocation5 + $0x28] sm:$0xf]
        %v227 = vld [vmem:[#allocation5 + $0x2c] sm:$0xf]
        %v228 = vld [vmem:[#allocation5 + $0x30] sm:$0xf]
        %v229 = vld [vmem:[#allocation5 + $0x34] sm:$0xf]
        %v230 = vld [vmem:[#allocation5 + $0x38] sm:$0xf]
        %v231 = vld [vmem:[#allocation5 + $0x3c] sm:$0xf]
        %v232 = vpack.c.bf16 %v214, %v214
        %v233 = vlaneseq
        %v234 = vshrl.u32 %v233, 7
        %v235 = vsub.s32 0, %v234
        %v236 = vrot.slane %v215, %v235
        %v253 = vunpack.c.l.b16 %v216
        %v254 = vunpack.c.l.b16 %v217
        %v255 = vunpack.c.l.b16 %v218
        %v256 = vunpack.c.l.b16 %v219
        %v257 = vunpack.c.l.b16 %v220
        %v258 = vunpack.c.l.b16 %v221
        %v259 = vunpack.c.l.b16 %v222
        %v260 = vunpack.c.l.b16 %v223
        %v261 = vunpack.c.l.b16 %v224
        %v262 = vunpack.c.l.b16 %v225
        %v263 = vunpack.c.l.b16 %v226
        %v264 = vunpack.c.l.b16 %v227
        %v265 = vunpack.c.l.b16 %v228
        %v266 = vunpack.c.l.b16 %v229
        %v267 = vunpack.c.l.b16 %v230
        %v268 = vunpack.c.l.b16 %v231
        %v269 = vpack.c.b16 %v254, %v253
        %v270 = vpack.c.b16 %v256, %v255
        %v271 = vpack.c.b16 %v258, %v257
        %v272 = vpack.c.b16 %v260, %v259
        %v273 = vpack.c.b16 %v262, %v261
        %v274 = vpack.c.b16 %v264, %v263
        %v275 = vpack.c.b16 %v266, %v265
        %v276 = vpack.c.b16 %v268, %v267
        %285 = vmatprep.subr.bf16.mxu0 0
        %286 = vmatpush1.bf16.msra.mxu0 %v276
        %287 = vmatprep.subr.bf16.mxu0 0
        %288 = vmatpush1.bf16.msra.mxu0 %v275
        %289 = vmatprep.subr.bf16.mxu0 0
        %290 = vmatpush1.bf16.msra.mxu0 %v274
        %291 = vmatprep.subr.bf16.mxu0 0
        %292 = vmatpush1.bf16.msra.mxu0 %v273
        %293 = vmatprep.subr.bf16.mxu0 0
        %294 = vmatpush1.bf16.msra.mxu0 %v272
        %295 = vmatprep.subr.bf16.mxu0 0
        %296 = vmatpush1.bf16.msra.mxu0 %v271
        %297 = vmatprep.subr.bf16.mxu0 0
        %298 = vmatpush1.bf16.msra.mxu0 %v270
        %299 = vmatprep.subr.bf16.mxu0 0
        %300 = vmatpush1.bf16.msra.mxu0 %v269
        %301 = vmatprep.subr.bf16.mxu0 0
        %302 = vmatpush2.bf16.msra.mxu0 0
        %303 = vmatprep.subr.bf16.mxu0 0
        %304 = vmatpush2.bf16.msra.mxu0 0
        %305 = vmatprep.subr.bf16.mxu0 0
        %306 = vmatpush2.bf16.msra.mxu0 0
        %307 = vmatprep.subr.bf16.mxu0 0
        %308 = vmatpush2.bf16.msra.mxu0 0
        %309 = vmatprep.subr.bf16.mxu0 0
        %310 = vmatpush2.bf16.msra.mxu0 0
        %311 = vmatprep.subr.bf16.mxu0 0
        %312 = vmatpush2.bf16.msra.mxu0 0
        %313 = vmatprep.subr.bf16.mxu0 0
        %314 = vmatpush2.bf16.msra.mxu0 0
        %315 = vmatprep.subr.bf16.mxu0 0
        %316 = vmatpush2.bf16.msra.mxu0 0
        %317 = vmatprep.mubr.bf16.mxu0 0
        %318 = vmatmul.mubr.bf16.gmra.mxu0 %v232
        %v319 = vpop.f32.mrf.mxu0
        %v320 = vadd.f32 %v236, %v319
        %v321 = vpop.f32.mrf.mxu0
        %v322 = vpop.f32.mrf.mxu0
        %v323 = vpop.f32.mrf.mxu0
        %324 = vdwg.mxu0
        %v325 = vxor.u32 %v320, 2147483648
        %v326 = vmul.f32 %v325, 1.442695
        %v327 = vpow.pop %v326
        %v328 = vadd.f32 %v327, 1.0
        %v329 = vrcp.pop %v328
        %v330 = vmul.f32 1.0, %v329
        %332 = vrot.lane.b32.xlu0 %v320, 32
        %v333 = vpop.permute.xlu0 %332
        %v335 = vmul.f32 %v330, %v333
        %337 = vrot.lane.b32.xlu0 %v335, 64
        %v338 = vpop.permute.xlu0 %337
        %v340 = vadd.f32 %v320, %v338
        %v341 = vtanh.pop %v340
        %v342 = vsub.f32 1.0, %v330
        %344 = vrot.lane.b32.xlu0 %v341, 96
        %v345 = vpop.permute.xlu0 %344
        %v347 = vmul.f32 %v342, %v345
        %v348 = vld [vmem:[#allocation5 + $0x40] sm:$0xf]
        %v349 = vld [vmem:[#allocation5 + $0x44] sm:$0xf]
        %v350 = vld [vmem:[#allocation5 + $0x48] sm:$0xf]
        %v351 = vld [vmem:[#allocation5 + $0x4c] sm:$0xf]
        %v352 = vpack.c.bf16 %v347, %v347
        %v353 = vlaneseq
        %v354 = vshrl.u32 %v353, 7
        %v355 = vsub.s32 1, %v354
        %v356 = vrot.slane %v215, %v355
        %358 = vrot.lane.b32.xlu0 %v352, 96
        %v359 = vpop.permute.xlu0 %358
        %v364 = vunpack.c.l.b16 %v348
        %v365 = vunpack.c.l.b16 %v349
        %v366 = vunpack.c.l.b16 %v350
        %v367 = vunpack.c.l.b16 %v351
        %v368 = vpack.c.b16 %v365, %v364
        %v369 = vpack.c.b16 %v367, %v366
        %vm372 = vcmask 261120
        %v374 = vsel %vm372, %v359, 0
        %376 = vmatprep.subr.bf16.mxu0 0
        %377 = vmatpush1.bf16.msra.mxu0 0
        %378 = vmatprep.subr.bf16.mxu0 0
        %379 = vmatpush1.bf16.msra.mxu0 0
        %380 = vmatprep.subr.bf16.mxu0 0
        %381 = vmatpush1.bf16.msra.mxu0 0
        %382 = vmatprep.subr.bf16.mxu0 0
        %383 = vmatpush1.bf16.msra.mxu0 0
        %384 = vmatprep.subr.bf16.mxu0 0
        %385 = vmatpush1.bf16.msra.mxu0 0
        %386 = vmatprep.subr.bf16.mxu0 0
        %387 = vmatpush1.bf16.msra.mxu0 0
        %388 = vmatprep.subr.bf16.mxu0 0
        %389 = vmatpush1.bf16.msra.mxu0 %v369
        %390 = vmatprep.subr.bf16.mxu0 0
        %391 = vmatpush1.bf16.msra.mxu0 %v368
        %392 = vmatprep.subr.bf16.mxu0 0
        %393 = vmatpush2.bf16.msra.mxu0 0
        %394 = vmatprep.subr.bf16.mxu0 0
        %395 = vmatpush2.bf16.msra.mxu0 0
        %396 = vmatprep.subr.bf16.mxu0 0
        %397 = vmatpush2.bf16.msra.mxu0 0
        %398 = vmatprep.subr.bf16.mxu0 0
        %399 = vmatpush2.bf16.msra.mxu0 0
        %400 = vmatprep.subr.bf16.mxu0 0
        %401 = vmatpush2.bf16.msra.mxu0 0
        %402 = vmatprep.subr.bf16.mxu0 0
        %403 = vmatpush2.bf16.msra.mxu0 0
        %404 = vmatprep.subr.bf16.mxu0 0
        %405 = vmatpush2.bf16.msra.mxu0 0
        %406 = vmatprep.subr.bf16.mxu0 0
        %407 = vmatpush2.bf16.msra.mxu0 0
        %408 = vmatprep.mubr.bf16.mxu0 0
        %409 = vmatmul.mubr.bf16.gmra.mxu0 %v374
        %v410 = vpop.f32.mrf.mxu0
        %v411 = vadd.f32 %v356, %v410
        %v412 = vpop.f32.mrf.mxu0
        %v413 = vpop.f32.mrf.mxu0
        %v414 = vpop.f32.mrf.mxu0
        %415 = vdwg.mxu0
        %v416 = vxor.u32 %v411, 2147483648
        %v417 = vmul.f32 %v416, 1.442695
        %v418 = vpow.pop %v417
        %v419 = vadd.f32 %v418, 1.0
        %v420 = vrcp.pop %v419
        %v421 = vmul.f32 1.0, %v420
        %423 = vrot.lane.b32.xlu0 %v411, 32
        %v424 = vpop.permute.xlu0 %423
        %v426 = vmul.f32 %v421, %v424
        %428 = vrot.lane.b32.xlu0 %v426, 64
        %v429 = vpop.permute.xlu0 %428
        %v431 = vadd.f32 %v411, %v429
        %v432 = vtanh.pop %v431
        %v433 = vsub.f32 1.0, %v421
        %435 = vrot.lane.b32.xlu0 %v432, 96
        %v436 = vpop.permute.xlu0 %435
        %v438 = vmul.f32 %v433, %v436
        %v439 = vld [vmem:[#allocation5 + $0x50] sm:$0xf]
        %v440 = vld [vmem:[#allocation5 + $0x54] sm:$0xf]
        %v441 = vld [vmem:[#allocation5 + $0x58] sm:$0xf]
        %v442 = vld [vmem:[#allocation5 + $0x5c] sm:$0xf]
        %v443 = vpack.c.bf16 %v438, %v438
        %445 = vrot.lane.b32.xlu0 %v443, 96
        %v446 = vpop.permute.xlu0 %445
        %v451 = vunpack.c.l.b16 %v439
        %v452 = vunpack.c.l.b16 %v440
        %v453 = vunpack.c.l.b16 %v441
        %v454 = vunpack.c.l.b16 %v442
        %v455 = vpack.c.b16 %v452, %v451
        %v456 = vpack.c.b16 %v454, %v453
        %v460 = vsel %vm372, %v446, 0
        %462 = vmatprep.subr.bf16.mxu0 0
        %463 = vmatpush1.bf16.msra.mxu0 0
        %464 = vmatprep.subr.bf16.mxu0 0
        %465 = vmatpush1.bf16.msra.mxu0 0
        %466 = vmatprep.subr.bf16.mxu0 0
        %467 = vmatpush1.bf16.msra.mxu0 0
        %468 = vmatprep.subr.bf16.mxu0 0
        %469 = vmatpush1.bf16.msra.mxu0 0
        %470 = vmatprep.subr.bf16.mxu0 0
        %471 = vmatpush1.bf16.msra.mxu0 0
        %472 = vmatprep.subr.bf16.mxu0 0
        %473 = vmatpush1.bf16.msra.mxu0 0
        %474 = vmatprep.subr.bf16.mxu0 0
        %475 = vmatpush1.bf16.msra.mxu0 %v456
        %476 = vmatprep.subr.bf16.mxu0 0
        %477 = vmatpush1.bf16.msra.mxu0 %v455
        %478 = vmatprep.subr.bf16.mxu0 0
        %479 = vmatpush2.bf16.msra.mxu0 0
        %480 = vmatprep.subr.bf16.mxu0 0
        %481 = vmatpush2.bf16.msra.mxu0 0
        %482 = vmatprep.subr.bf16.mxu0 0
        %483 = vmatpush2.bf16.msra.mxu0 0
        %484 = vmatprep.subr.bf16.mxu0 0
        %485 = vmatpush2.bf16.msra.mxu0 0
        %486 = vmatprep.subr.bf16.mxu0 0
        %487 = vmatpush2.bf16.msra.mxu0 0
        %488 = vmatprep.subr.bf16.mxu0 0
        %489 = vmatpush2.bf16.msra.mxu0 0
        %490 = vmatprep.subr.bf16.mxu0 0
        %491 = vmatpush2.bf16.msra.mxu0 0
        %492 = vmatprep.subr.bf16.mxu0 0
        %493 = vmatpush2.bf16.msra.mxu0 0
        %494 = vmatprep.mubr.bf16.mxu0 0
        %495 = vmatmul.mubr.bf16.gmra.mxu0 %v460
        %v496 = vpop.f32.mrf.mxu0
        %v497 = vadd.f32 0.0, %v496
        %v498 = vpop.f32.mrf.mxu0
        %v499 = vpop.f32.mrf.mxu0
        %v500 = vpop.f32.mrf.mxu0
        %501 = vdwg.mxu0
        %v502 = vlaneseq
        %v503 = vshrl.u32 %v502, 7
        %v504 = vsub.s32 2, %v503
        %v505 = vrot.slane %v215, %v504
        %v506 = vadd.f32 %v497, %v505
        %vm507 = vcmp.ge.f32.partialorder %v506, 0.0
        %509 = vrot.lane.b32.xlu0 %v506, 32
        %v510 = vpop.permute.xlu0 %509
        %v512 = vmul.f32 %v505, %v510
        %514 = vrot.lane.b32.xlu0 %v512, 96
        %v515 = vpop.permute.xlu0 %514
        %v517 = vsel %vm507, %v506, %v515
        %v518 = vld [vmem:[#allocation5 + $0x60] sm:$0xf]
        %v519 = vld [vmem:[#allocation5 + $0x64] sm:$0xf]
        %v520 = vld [vmem:[#allocation5 + $0x68] sm:$0xf]
        %v521 = vld [vmem:[#allocation5 + $0x6c] sm:$0xf]
        %v522 = vpack.c.bf16 %v517, %v517
        %v527 = vunpack.c.l.b16 %v518
        %v528 = vunpack.c.l.b16 %v519
        %v529 = vunpack.c.l.b16 %v520
        %v530 = vunpack.c.l.b16 %v521
        %v531 = vpack.c.b16 %v528, %v527
        %v532 = vpack.c.b16 %v530, %v529
        %v536 = vsel %vm372, %v522, 0
        %538 = vmatprep.subr.bf16.mxu0 0
        %539 = vmatpush1.bf16.msra.mxu0 0
        %540 = vmatprep.subr.bf16.mxu0 0
        %541 = vmatpush1.bf16.msra.mxu0 0
        %542 = vmatprep.subr.bf16.mxu0 0
        %543 = vmatpush1.bf16.msra.mxu0 0
        %544 = vmatprep.subr.bf16.mxu0 0
        %545 = vmatpush1.bf16.msra.mxu0 0
        %546 = vmatprep.subr.bf16.mxu0 0
        %547 = vmatpush1.bf16.msra.mxu0 0
        %548 = vmatprep.subr.bf16.mxu0 0
        %549 = vmatpush1.bf16.msra.mxu0 0
        %550 = vmatprep.subr.bf16.mxu0 0
        %551 = vmatpush1.bf16.msra.mxu0 %v532
        %552 = vmatprep.subr.bf16.mxu0 0
        %553 = vmatpush1.bf16.msra.mxu0 %v531
        %554 = vmatprep.subr.bf16.mxu0 0
        %555 = vmatpush2.bf16.msra.mxu0 0
        %556 = vmatprep.subr.bf16.mxu0 0
        %557 = vmatpush2.bf16.msra.mxu0 0
        %558 = vmatprep.subr.bf16.mxu0 0
        %559 = vmatpush2.bf16.msra.mxu0 0
        %560 = vmatprep.subr.bf16.mxu0 0
        %561 = vmatpush2.bf16.msra.mxu0 0
        %562 = vmatprep.subr.bf16.mxu0 0
        %563 = vmatpush2.bf16.msra.mxu0 0
        %564 = vmatprep.subr.bf16.mxu0 0
        %565 = vmatpush2.bf16.msra.mxu0 0
        %566 = vmatprep.subr.bf16.mxu0 0
        %567 = vmatpush2.bf16.msra.mxu0 0
        %568 = vmatprep.subr.bf16.mxu0 0
        %569 = vmatpush2.bf16.msra.mxu0 0
        %570 = vmatprep.mubr.bf16.mxu0 0
        %571 = vmatmul.mubr.bf16.gmra.mxu0 %v536
        %v572 = vpop.f32.mrf.mxu0
        %v573 = vadd.f32 0.0, %v572
        %v574 = vpop.f32.mrf.mxu0
        %v575 = vpop.f32.mrf.mxu0
        %v576 = vpop.f32.mrf.mxu0
        %577 = vdwg.mxu0
        %v578 = vlaneseq
        %v579 = vshrl.u32 %v578, 7
        %v580 = vsub.s32 3, %v579
        %v581 = vrot.slane %v215, %v580
        %v582 = vadd.f32 %v573, %v581
        %vm583 = vcmp.ge.f32.partialorder %v582, 0.0
        %585 = vrot.lane.b32.xlu0 %v582, 32
        %v586 = vpop.permute.xlu0 %585
        %v588 = vmul.f32 %v581, %v586
        %590 = vrot.lane.b32.xlu0 %v588, 96
        %v591 = vpop.permute.xlu0 %590
        %v593 = vsel %vm583, %v582, %v591
        %v594 = vld [vmem:[#allocation5 + $0x70] sm:$0xf]
        %v595 = vld [vmem:[#allocation5 + $0x74] sm:$0xf]
        %v596 = vld [vmem:[#allocation5 + $0x78] sm:$0xf]
        %v597 = vld [vmem:[#allocation5 + $0x7c] sm:$0xf]
        %v598 = vpack.c.bf16 %v593, %v593
        %v603 = vunpack.c.l.b16 %v594
        %v604 = vunpack.c.l.b16 %v595
        %v605 = vunpack.c.l.b16 %v596
        %v606 = vunpack.c.l.b16 %v597
        %v607 = vpack.c.b16 %v604, %v603
        %v608 = vpack.c.b16 %v606, %v605
        %v612 = vsel %vm372, %v598, 0
        %614 = vmatprep.subr.bf16.mxu0 0
        %615 = vmatpush1.bf16.msra.mxu0 0
        %616 = vmatprep.subr.bf16.mxu0 0
        %617 = vmatpush1.bf16.msra.mxu0 0
        %618 = vmatprep.subr.bf16.mxu0 0
        %619 = vmatpush1.bf16.msra.mxu0 0
        %620 = vmatprep.subr.bf16.mxu0 0
        %621 = vmatpush1.bf16.msra.mxu0 0
        %622 = vmatprep.subr.bf16.mxu0 0
        %623 = vmatpush1.bf16.msra.mxu0 0
        %624 = vmatprep.subr.bf16.mxu0 0
        %625 = vmatpush1.bf16.msra.mxu0 0
        %626 = vmatprep.subr.bf16.mxu0 0
        %627 = vmatpush1.bf16.msra.mxu0 %v608
        %628 = vmatprep.subr.bf16.mxu0 0
        %629 = vmatpush1.bf16.msra.mxu0 %v607
        %630 = vmatprep.subr.bf16.mxu0 0
        %631 = vmatpush2.bf16.msra.mxu0 0
        %632 = vmatprep.subr.bf16.mxu0 0
        %633 = vmatpush2.bf16.msra.mxu0 0
        %634 = vmatprep.subr.bf16.mxu0 0
        %635 = vmatpush2.bf16.msra.mxu0 0
        %636 = vmatprep.subr.bf16.mxu0 0
        %637 = vmatpush2.bf16.msra.mxu0 0
        %638 = vmatprep.subr.bf16.mxu0 0
        %639 = vmatpush2.bf16.msra.mxu0 0
        %640 = vmatprep.subr.bf16.mxu0 0
        %641 = vmatpush2.bf16.msra.mxu0 0
        %642 = vmatprep.subr.bf16.mxu0 0
        %643 = vmatpush2.bf16.msra.mxu0 0
        %644 = vmatprep.subr.bf16.mxu0 0
        %645 = vmatpush2.bf16.msra.mxu0 0
        %646 = vmatprep.mubr.bf16.mxu0 0
        %647 = vmatmul.mubr.bf16.gmra.mxu0 %v612
        %v648 = vpop.f32.mrf.mxu0
        %v649 = vadd.f32 0.0, %v648
        %v650 = vpop.f32.mrf.mxu0
        %v651 = vpop.f32.mrf.mxu0
        %v652 = vpop.f32.mrf.mxu0
        %653 = vdwg.mxu0
        %v654 = vlaneseq
        %v655 = vshrl.u32 %v654, 7
        %v656 = vsub.s32 4, %v655
        %v657 = vrot.slane %v215, %v656
        %v658 = vadd.f32 %v649, %v657
        %v659 = vmul.f32 %v658, 0.5
        %v660 = vmul.f32 %v659, 1.442695
        %v661 = vpow.pop %v660
        %663 = vrot.lane.b32.xlu0 %v661, 8
        %v664 = vpop.permute.xlu0 %663
        %v666 = vmul.f32 %v214, %v664
        %668 = vrot.lane.b32.xlu0 %v666, 112
        %v669 = vpop.permute.xlu0 %668
        %v671 = vadd.f32 %v658, %v669
        %vm672 = vcmask 64512
        %v673 = vsel %vm672, %v671, 0.0
        %v674 = vld [vmem:[#allocation5 + $0x80] sm:$0xf]
        %v675 = vld [vmem:[#allocation5 + $0x84] sm:$0xf]
        %v676 = vpack.c.bf16 %v673, %v673
        %v679 = vunpack.c.l.b16 %v674
        %v680 = vunpack.c.l.b16 %v675
        %v681 = vpack.c.b16 %v680, %v679
        %vm683 = vcmask 130048
        %v685 = vsel %vm683, %v676, 0
        %687 = vmatprep.subr.bf16.mxu0 0
        %688 = vmatpush1.bf16.msra.mxu0 0
        %689 = vmatprep.subr.bf16.mxu0 0
        %690 = vmatpush1.bf16.msra.mxu0 0
        %691 = vmatprep.subr.bf16.mxu0 0
        %692 = vmatpush1.bf16.msra.mxu0 0
        %693 = vmatprep.subr.bf16.mxu0 0
        %694 = vmatpush1.bf16.msra.mxu0 0
        %695 = vmatprep.subr.bf16.mxu0 0
        %696 = vmatpush1.bf16.msra.mxu0 0
        %697 = vmatprep.subr.bf16.mxu0 0
        %698 = vmatpush1.bf16.msra.mxu0 0
        %699 = vmatprep.subr.bf16.mxu0 0
        %700 = vmatpush1.bf16.msra.mxu0 0
        %701 = vmatprep.subr.bf16.mxu0 0
        %702 = vmatpush1.bf16.msra.mxu0 %v681
        %703 = vmatprep.subr.bf16.mxu0 0
        %704 = vmatpush2.bf16.msra.mxu0 0
        %705 = vmatprep.subr.bf16.mxu0 0
        %706 = vmatpush2.bf16.msra.mxu0 0
        %707 = vmatprep.subr.bf16.mxu0 0
        %708 = vmatpush2.bf16.msra.mxu0 0
        %709 = vmatprep.subr.bf16.mxu0 0
        %710 = vmatpush2.bf16.msra.mxu0 0
        %711 = vmatprep.subr.bf16.mxu0 0
        %712 = vmatpush2.bf16.msra.mxu0 0
        %713 = vmatprep.subr.bf16.mxu0 0
        %714 = vmatpush2.bf16.msra.mxu0 0
        %715 = vmatprep.subr.bf16.mxu0 0
        %716 = vmatpush2.bf16.msra.mxu0 0
        %717 = vmatprep.subr.bf16.mxu0 0
        %718 = vmatpush2.bf16.msra.mxu0 0
        %719 = vmatprep.mubr.bf16.mxu0 0
        %720 = vmatmul.mubr.bf16.gmra.mxu0 %v685
        %v721 = vpop.f32.mrf.mxu0
        %v722 = vadd.f32 0.0, %v721
        %v723 = vpop.f32.mrf.mxu0
        %v724 = vpop.f32.mrf.mxu0
        %v725 = vpop.f32.mrf.mxu0
        %726 = vdwg.mxu0
        %v727 = vlaneseq
        %v728 = vshrl.u32 %v727, 7
        %v729 = vsub.s32 5, %v728
        %v730 = vrot.slane %v215, %v729
        %v731 = vadd.f32 %v722, %v730
        %vm732 = vcmp.ge.f32.partialorder %v731, 0.0
        %734 = vrot.lane.b32.xlu0 %v731, 32
        %v735 = vpop.permute.xlu0 %734
        %v737 = vmul.f32 %v730, %v735
        %739 = vrot.lane.b32.xlu0 %v737, 96
        %v740 = vpop.permute.xlu0 %739
        %v742 = vsel %vm732, %v731, %v740
        %v743 = vld [vmem:[#allocation5 + $0x88] sm:$0xf]
        %v744 = vld [vmem:[#allocation5 + $0x8c] sm:$0xf]
        %v745 = vld [vmem:[#allocation5 + $0x90] sm:$0xf]
        %v746 = vld [vmem:[#allocation5 + $0x94] sm:$0xf]
        %v747 = vpack.c.bf16 %v742, %v742
        %v752 = vunpack.c.l.b16 %v743
        %v753 = vunpack.c.l.b16 %v744
        %v754 = vunpack.c.l.b16 %v745
        %v755 = vunpack.c.l.b16 %v746
        %v756 = vpack.c.b16 %v753, %v752
        %v757 = vpack.c.b16 %v755, %v754
        %v761 = vsel %vm372, %v747, 0
        %763 = vmatprep.subr.bf16.mxu0 0
        %764 = vmatpush1.bf16.msra.mxu0 0
        %765 = vmatprep.subr.bf16.mxu0 0
        %766 = vmatpush1.bf16.msra.mxu0 0
        %767 = vmatprep.subr.bf16.mxu0 0
        %768 = vmatpush1.bf16.msra.mxu0 0
        %769 = vmatprep.subr.bf16.mxu0 0
        %770 = vmatpush1.bf16.msra.mxu0 0
        %771 = vmatprep.subr.bf16.mxu0 0
        %772 = vmatpush1.bf16.msra.mxu0 0
        %773 = vmatprep.subr.bf16.mxu0 0
        %774 = vmatpush1.bf16.msra.mxu0 0
        %775 = vmatprep.subr.bf16.mxu0 0
        %776 = vmatpush1.bf16.msra.mxu0 %v757
        %777 = vmatprep.subr.bf16.mxu0 0
        %778 = vmatpush1.bf16.msra.mxu0 %v756
        %779 = vmatprep.subr.bf16.mxu0 0
        %780 = vmatpush2.bf16.msra.mxu0 0
        %781 = vmatprep.subr.bf16.mxu0 0
        %782 = vmatpush2.bf16.msra.mxu0 0
        %783 = vmatprep.subr.bf16.mxu0 0
        %784 = vmatpush2.bf16.msra.mxu0 0
        %785 = vmatprep.subr.bf16.mxu0 0
        %786 = vmatpush2.bf16.msra.mxu0 0
        %787 = vmatprep.subr.bf16.mxu0 0
        %788 = vmatpush2.bf16.msra.mxu0 0
        %789 = vmatprep.subr.bf16.mxu0 0
        %790 = vmatpush2.bf16.msra.mxu0 0
        %791 = vmatprep.subr.bf16.mxu0 0
        %792 = vmatpush2.bf16.msra.mxu0 0
        %793 = vmatprep.subr.bf16.mxu0 0
        %794 = vmatpush2.bf16.msra.mxu0 0
        %795 = vmatprep.mubr.bf16.mxu0 0
        %796 = vmatmul.mubr.bf16.gmra.mxu0 %v761
        %v797 = vpop.f32.mrf.mxu0
        %v798 = vadd.f32 0.0, %v797
        %v799 = vpop.f32.mrf.mxu0
        %v800 = vpop.f32.mrf.mxu0
        %v801 = vpop.f32.mrf.mxu0
        %802 = vdwg.mxu0
        %v803 = vlaneseq
        %v804 = vshrl.u32 %v803, 7
        %v805 = vsub.s32 6, %v804
        %v806 = vrot.slane %v215, %v805
        %v807 = vadd.f32 %v798, %v806
        %vm808 = vcmp.ge.f32.partialorder %v807, 0.0
        %810 = vrot.lane.b32.xlu0 %v807, 32
        %v811 = vpop.permute.xlu0 %810
        %v813 = vmul.f32 %v806, %v811
        %815 = vrot.lane.b32.xlu0 %v813, 96
        %v816 = vpop.permute.xlu0 %815
        %v818 = vsel %vm808, %v807, %v816
        %v819 = vld [vmem:[#allocation5 + $0x98] sm:$0xf]
        %v820 = vld [vmem:[#allocation5 + $0x9c] sm:$0xf]
        %v821 = vld [vmem:[#allocation5 + $0xa0] sm:$0xf]
        %v822 = vld [vmem:[#allocation5 + $0xa4] sm:$0xf]
        %v823 = vpack.c.bf16 %v818, %v818
        %v828 = vunpack.c.l.b16 %v819
        %v829 = vunpack.c.l.b16 %v820
        %v830 = vunpack.c.l.b16 %v821
        %v831 = vunpack.c.l.b16 %v822
        %v832 = vpack.c.b16 %v829, %v828
        %v833 = vpack.c.b16 %v831, %v830
        %v837 = vsel %vm372, %v823, 0
        %839 = vmatprep.subr.bf16.mxu0 0
        %840 = vmatpush1.bf16.msra.mxu0 0
        %841 = vmatprep.subr.bf16.mxu0 0
        %842 = vmatpush1.bf16.msra.mxu0 0
        %843 = vmatprep.subr.bf16.mxu0 0
        %844 = vmatpush1.bf16.msra.mxu0 0
        %845 = vmatprep.subr.bf16.mxu0 0
        %846 = vmatpush1.bf16.msra.mxu0 0
        %847 = vmatprep.subr.bf16.mxu0 0
        %848 = vmatpush1.bf16.msra.mxu0 0
        %849 = vmatprep.subr.bf16.mxu0 0
        %850 = vmatpush1.bf16.msra.mxu0 0
        %851 = vmatprep.subr.bf16.mxu0 0
        %852 = vmatpush1.bf16.msra.mxu0 %v833
        %853 = vmatprep.subr.bf16.mxu0 0
        %854 = vmatpush1.bf16.msra.mxu0 %v832
        %855 = vmatprep.subr.bf16.mxu0 0
        %856 = vmatpush2.bf16.msra.mxu0 0
        %857 = vmatprep.subr.bf16.mxu0 0
        %858 = vmatpush2.bf16.msra.mxu0 0
        %859 = vmatprep.subr.bf16.mxu0 0
        %860 = vmatpush2.bf16.msra.mxu0 0
        %861 = vmatprep.subr.bf16.mxu0 0
        %862 = vmatpush2.bf16.msra.mxu0 0
        %863 = vmatprep.subr.bf16.mxu0 0
        %864 = vmatpush2.bf16.msra.mxu0 0
        %865 = vmatprep.subr.bf16.mxu0 0
        %866 = vmatpush2.bf16.msra.mxu0 0
        %867 = vmatprep.subr.bf16.mxu0 0
        %868 = vmatpush2.bf16.msra.mxu0 0
        %869 = vmatprep.subr.bf16.mxu0 0
        %870 = vmatpush2.bf16.msra.mxu0 0
        %871 = vmatprep.mubr.bf16.mxu0 0
        %872 = vmatmul.mubr.bf16.gmra.mxu0 %v837
        %v873 = vpop.f32.mrf.mxu0
        %v874 = vadd.f32 0.0, %v873
        %v875 = vpop.f32.mrf.mxu0
        %v876 = vpop.f32.mrf.mxu0
        %v877 = vpop.f32.mrf.mxu0
        %878 = vdwg.mxu0
        %v879 = vlaneseq
        %v880 = vshrl.u32 %v879, 7
        %v881 = vsub.s32 7, %v880
        %v882 = vrot.slane %v215, %v881
        %v883 = vadd.f32 %v874, %v882
        %v884 = vxor.u32 %v883, 2147483648
        %v885 = vmul.f32 %v884, 1.442695
        %v886 = vpow.pop %v885
        %v887 = vadd.f32 %v886, 1.0
        %v888 = vrcp.pop %v887
        %v889 = vmul.f32 1.0, %v888
        %891 = vrot.lane.b32.xlu0 %v658, 16
        %v892 = vpop.permute.xlu0 %891
        %895 = vrot.lane.b32.xlu0 %v438, 32
        %v896 = vpop.permute.xlu0 %895
        %v898 = vsel %vm683, %v889, %v892
        %vm899 = vcmask 195584
        %v900 = vsel %vm899, %v898, %v892
        %v901 = vsel %vm372, %v900, %v347
        %vm902 = vcmask 523264
        %v903 = vsel %vm902, %v901, %v896
        %vm904 = vcmask 785408
        %v905 = vsel %vm904, %v903, 0.0
        %906 = vst [vmem:[%s212] sm:$0xff] %v905
        %s907 = sand.u32 %s97, 1
        %s908 = scalar_lea.sflag [#allocation4], %s907
        %s909 = sand.u32 %s97, 1
        %s910 = smul.addr %s909, 8
        %s911 = scalar_lea.vmem [#allocation8], %s910
        // Predicated region
        $region45: #{tpu_custom_call.1} parent=31 // pred_check
          %p912 = pneg %p107
        $region46: #{tpu_custom_call.1} parent=31 // pred_check_branch
          %914 = sbr.rel (%p912) target = $region48
        $region47: #{tpu_custom_call.1} parent=31 // pred_region
          %s916 = ssub.s32 128, 128
          %917 = vsyncadd %s908, %s916
          %s918 = smul.addr %s21, 128
          %s919 = scalar_lea.hbm %s3, %s918
          %s921 = sshll.u32 %s911, 4
          %s922 = int_to_ptr.vmem [resolvable:$true] %s921
          %924 = dma.vmem_to_hbm [thread:$0]  %s922, 128, %s919, %s908
        $region48: #{tpu_custom_call.1} parent=31 // pred_fallthru
          _
      $region32: #{tpu_custom_call.1} parent=5 // pred_fallthru
        _
      %p925 = scmp.le.s32.totalorder 2, %s16
      // Predicated region
      $region49: #{tpu_custom_call.1} parent=5 // pred_check
        %p926 = pneg %p925
      $region50: #{tpu_custom_call.1} parent=5 // pred_check_branch
        %928 = sbr.rel (%p926) target = $region52
      $region51: #{tpu_custom_call.1} parent=5 // pred_region
        %s929 = ssub.s32 %s16, 2
        // Predicated region
        $region53: #{tpu_custom_call.1} parent=51 // pred_check
          %p930 = pneg %p113
        $region54: #{tpu_custom_call.1} parent=51 // pred_check_branch
          %932 = sbr.rel (%p930) target = $region56
        $region55: #{tpu_custom_call.1} parent=51 // pred_region
          %s933 = sand.u32 %s98, 1
          %s934 = scalar_lea.sflag [#allocation4], %s933
          %s935 = sand.u32 %s98, 1
          %s936 = smul.addr %s935, 8
          %s937 = scalar_lea.vmem [#allocation8], %s936
          %938 = dma.done %s934, 128
        $region56: #{tpu_custom_call.1} parent=51 // pred_fallthru
          _
      $region52: #{tpu_custom_call.1} parent=5 // pred_fallthru
        _
    $region6: #{tpu_custom_call.1} parent=1 // loop_footer
      %s20 = sadd.s32 1, %s16
    $region7: #{tpu_custom_call.1} parent=1 // loop_footer_branch
      %15 = sbr.rel target = $region3
    $region8: #{tpu_custom_call.1} parent=1 // loop_exit
      _
    %939 = vsyncpa [#allocation3], 1
    %s940 = scalar_lea.sflag [#allocation3], 1
    %941 = vsyncpa %s940, 1
    %942 = vsyncpa [#allocation6], 1
    %943 = vsyncpa [#allocation4], 1
    %s944 = scalar_lea.sflag [#allocation4], 1
    %945 = vsyncpa %s944, 1

</llo_original>
